<compile_context>
chip_gen: v5e
topology: v5e:2x2
jax: 0.10.0
libtpu: 0.0.40
codegen_flags: <defaults>
</compile_context>

<pallas_src>
import math

import jax
import jax.numpy as jnp
from jax.experimental import pallas as pl
from jax.experimental.pallas import tpu as pltpu


def make_pe_table(d_model: int, max_len: int = 5000) -> jnp.ndarray:
    """Same construction as the PyTorch __init__ buffer (float32)."""
    position = jnp.arange(0, max_len, dtype=jnp.float32)[:, None]          # (L, 1)
    div_term = jnp.exp(jnp.arange(0, d_model, 2, dtype=jnp.float32)
                       * (-math.log(10000.0) / d_model))                   # (ceil(D/2),)
    angles = position * div_term                                           # (L, ceil(D/2))
    pe = jnp.zeros((max_len, d_model), dtype=jnp.float32)
    pe = pe.at[:, 0::2].set(jnp.sin(angles))
    cos = jnp.cos(angles)
    pe = pe.at[:, 1::2].set(cos[:, : d_model // 2] if d_model % 2 == 1 else cos)
    return pe                                                              # (L, D)


def _posenc_kernel(x_ref, pe_ref, o_ref):
    # x_ref : (tB, tS, Dx)     batch-tile x seq-tile block of the input
    # pe_ref: (tS, Dm)         positional-table tile (resident across batch)
    # o_ref : (tB, tS, Dx+Dm)
    dx = x_ref.shape[-1]
    # x slab: direct 3-D tile copy (no reshape/squeeze needed).
    o_ref[:, :, :dx] = x_ref[...]
    # pe slab: load the resident tile once, then one 2-D store per batch row
    # (static unroll, tB is small) -- avoids materializing a broadcast copy.
    pe = pe_ref[...]
    for i in range(o_ref.shape[0]):
        o_ref[i, :, dx:] = pe


def _round_up(x: int, m: int) -> int:
    return ((x + m - 1) // m) * m


def _vmem_budget_and_limit():
    """Per-chip VMEM budget for double-buffered tiles + explicit scoped limit."""
    try:
        cap = int(getattr(pltpu.get_tpu_info(), "vmem_capacity_bytes",
                          128 * 1024 * 1024))
    except Exception:
        cap = 128 * 1024 * 1024
    # ~48 MiB on v5e/v6e (128 MiB physical), ~38 MiB on v7x (64 MiB physical).
    budget = min(48 * 1024 * 1024, int(cap * 0.6))
    limit = min(cap * 3 // 4, budget + (8 << 20))
    return budget, limit


def _choose_tiles(B, S, Dx, Dm, itemsize, vmem_budget_bytes,
                  target_step_out_bytes=2 << 20):
    """Pick (tB, tS): tS multiple of the sublane-packing factor, then grow tB
    until each grid step writes ~target_step_out_bytes, under the VMEM budget."""
    sub = max(8, 32 // itemsize)        # 8 for f32, 16 for bf16, 32 for int8

    def footprint(tb, ts):              # double-buffered x + pe + out tiles
        return 2 * (tb * ts * Dx * itemsize
                    + ts * Dm * itemsize
                    + tb * ts * (Dx + Dm) * itemsize)

    ts = min(1024, _round_up(max(S, 1), sub))
    ts = max(sub, (ts // sub) * sub)
    while ts > sub and footprint(1, ts) > vmem_budget_bytes:
        ts -= sub

    tb, tb_cap = 1, min(B, 32)          # cap keeps the per-row store unroll sane
    while (tb < tb_cap
           and tb * ts * (Dx + Dm) * itemsize < target_step_out_bytes
           and footprint(tb + 1, ts) <= vmem_budget_bytes):
        tb += 1

    # v7x megacore balance: prefer an even total grid-step count so the two
    # TensorCores split evenly (near-zero measured effect on single-TC chips).
    num_s, num_b = pl.cdiv(S, ts), pl.cdiv(B, tb)
    if num_s * num_b > 1 and (num_s * num_b) % 2 == 1 and tb > 1:
        for cand in range(tb - 1, 0, -1):
            if (num_s * pl.cdiv(B, cand)) % 2 == 0:
                tb = cand
                break
    return tb, ts


def positional_encoding(x: jnp.ndarray, pe_table: jnp.ndarray) -> jnp.ndarray:
    """x: (B, S, Dx), pe_table: (max_len, d_model). Returns (B, S, Dx+d_model)."""
    B, S, Dx = x.shape
    max_len, Dm = pe_table.shape
    assert S <= max_len, "sequence longer than the positional table"

    # Constant buffer: cast once in the wrapper so the kernel does no per-step
    # dtype convert and the pe tile is stored/read at its true (output) dtype.
    # Output dtype follows x.dtype (torch.cat-with-promotion would differ for
    # bf16 x; callers wanting f32 output should pass f32 x).
    if pe_table.dtype != x.dtype:
        pe_table = pe_table.astype(x.dtype)

    isz = jnp.dtype(x.dtype).itemsize
    budget, vmem_limit = _vmem_budget_and_limit()
    tB, tS = _choose_tiles(B, S, Dx, Dm, isz, budget)
    num_s, num_b = pl.cdiv(S, tS), pl.cdiv(B, tB)

    # Partial edge tiles: Pallas masks OOB output rows/batches; the pe
    # BlockSpec may read rows in [S, num_s*tS) of the (max_len, Dm) table,
    # which only feed masked-out output rows, so the result is unaffected.
    out_shape = jax.ShapeDtypeStruct((B, S, Dx + Dm), x.dtype)
    bytes_accessed = (B * S * Dx * isz            # x read
                      + S * Dm * isz              # pe read (resident across B)
                      + B * S * (Dx + Dm) * isz)  # out write

    return pl.pallas_call(
        _posenc_kernel,
        out_shape=out_shape,
        grid_spec=pltpu.PrefetchScalarGridSpec(
            num_scalar_prefetch=0,
            # Batch is the innermost (fastest-varying) axis so the pe tile's
            # block index (s, 0) is constant across it and stays resident.
            grid=(num_s, num_b),
            in_specs=[
                pl.BlockSpec((tB, tS, Dx), lambda s, b: (b, s, 0)),
                pl.BlockSpec((tS, Dm), lambda s, b: (s, 0)),
            ],
            out_specs=pl.BlockSpec((tB, tS, Dx + Dm), lambda s, b: (b, s, 0)),
        ),
        compiler_params=pltpu.CompilerParams(
            dimension_semantics=("parallel", "parallel"),
            vmem_limit_bytes=vmem_limit,
        ),
        cost_estimate=pl.CostEstimate(
            flops=0, transcendentals=0, bytes_accessed=bytes_accessed),
    )(x, pe_table)
    # TODO(synk): dropout is p=0.0 (identity); non-zero dropout would need
    # pltpu.prng_seed + pltpu.stateful_bernoulli inside the kernel.


if __name__ == "__main__":
    # Small-but-lane-dense demo: Dx = d_model = 128 so both output slabs are
    # 128-lane aligned (unmasked packed stores); B and S stay tiny.
    B, S, d_model = 2, 8, 128
    Dx = d_model  # input feature width (module concatenates, so any width works)

    key = jax.random.PRNGKey(0)
    x = jax.random.normal(key, (B, S, Dx), dtype=jnp.float32)

    pe_table = make_pe_table(d_model, max_len=5000)

    out = jax.block_until_ready(positional_encoding(x, pe_table))

    # Pure-JAX reference of the PyTorch forward (dropout p=0 -> identity).
    pos = jnp.broadcast_to(pe_table[None, :S, :], (B, S, d_model))
    ref = jnp.concatenate([x, pos], axis=2)

    assert out.shape == (B, S, Dx + d_model), out.shape
    assert jnp.allclose(out, ref, atol=1e-6), "mismatch vs reference"
    print("KERNEL_OK")
</pallas_src>

<mosaic_0001>
module attributes {stable_mosaic.version = 11 : i64} {
  func.func @_posenc_kernel(%arg0: i32, %arg1: i32, %arg2: memref<2x8x128xf32, #tpu.memory_space<vmem>>, %arg3: memref<8x128xf32, #tpu.memory_space<vmem>>, %arg4: memref<2x8x256xf32, #tpu.memory_space<vmem>>) attributes {dimension_semantics = [#tpu.dimension_semantics<parallel>, #tpu.dimension_semantics<parallel>], iteration_bounds = array<i64: 1, 1>, scalar_prefetch = 0 : i64, scratch_operands = 0 : i64, tpu.core_type = #tpu.core_type<tc>, window_params = [{transform_indices = @transform_0, window_bounds = array<i64: 2, 8, 128>}, {transform_indices = @transform_1, window_bounds = array<i64: 8, 128>}, {transform_indices = @transform_2, window_bounds = array<i64: 2, 8, 256>}]} {
    %c0 = arith.constant 0 : index
    %c0_0 = arith.constant 0 : index
    %c0_1 = arith.constant 0 : index
    %0 = vector.load %arg2[%c0, %c0_0, %c0_1] : memref<2x8x128xf32, #tpu.memory_space<vmem>>, vector<2x8x128xf32>
    %c0_2 = arith.constant 0 : index
    %c0_3 = arith.constant 0 : index
    %c0_4 = arith.constant 0 : index
    %1 = vector.load %arg4[%c0_2, %c0_3, %c0_4] : memref<2x8x256xf32, #tpu.memory_space<vmem>>, vector<2x8x128xf32>
    tpu.vector_store %arg4[%c0_2, %c0_3, %c0_4], %0 {strides = array<i32>} : memref<2x8x256xf32, #tpu.memory_space<vmem>>, vector<2x8x128xf32>,
    %c0_5 = arith.constant 0 : index
    %c0_6 = arith.constant 0 : index
    %2 = vector.load %arg3[%c0_5, %c0_6] : memref<8x128xf32, #tpu.memory_space<vmem>>, vector<8x128xf32>
    %c0_7 = arith.constant 0 : index
    %c0_8 = arith.constant 0 : index
    %c128 = arith.constant 128 : index
    %3 = vector.load %arg4[%c0_7, %c0_8, %c128] : memref<2x8x256xf32, #tpu.memory_space<vmem>>, vector<1x8x128xf32>
    %4 = vector.shape_cast %3 : vector<1x8x128xf32> to vector<8x128xf32>
    %5 = vector.shape_cast %2 : vector<8x128xf32> to vector<1x8x128xf32>
    tpu.vector_store %arg4[%c0_7, %c0_8, %c128], %5 {strides = array<i32>} : memref<2x8x256xf32, #tpu.memory_space<vmem>>, vector<1x8x128xf32>,
    %c1 = arith.constant 1 : index
    %c0_9 = arith.constant 0 : index
    %c128_10 = arith.constant 128 : index
    %6 = vector.load %arg4[%c1, %c0_9, %c128_10] : memref<2x8x256xf32, #tpu.memory_space<vmem>>, vector<1x8x128xf32>
    %7 = vector.shape_cast %6 : vector<1x8x128xf32> to vector<8x128xf32>
    %8 = vector.shape_cast %2 : vector<8x128xf32> to vector<1x8x128xf32>
    tpu.vector_store %arg4[%c1, %c0_9, %c128_10], %8 {strides = array<i32>} : memref<2x8x256xf32, #tpu.memory_space<vmem>>, vector<1x8x128xf32>,
    return
  }
  func.func @transform_0(%arg0: i32, %arg1: i32) -> (i32, i32, i32) {
    %c0_i32 = arith.constant 0 : i32
    %c0_i32_0 = arith.constant 0 : i32
    return %arg1, %arg0, %c0_i32 : i32, i32, i32
  }
  func.func @transform_1(%arg0: i32, %arg1: i32) -> (i32, i32) {
    %c0_i32 = arith.constant 0 : i32
    %c0_i32_0 = arith.constant 0 : i32
    return %arg0, %c0_i32 : i32, i32
  }
  func.func @transform_2(%arg0: i32, %arg1: i32) -> (i32, i32, i32) {
    %c0_i32 = arith.constant 0 : i32
    %c0_i32_0 = arith.constant 0 : i32
    return %arg1, %arg0, %c0_i32 : i32, i32, i32
  }
}

</mosaic_0001>

<llo_original>
// kernel: tpu_custom_call.1
$region0: #{tpu_custom_call.1}
  #allocation0 [shape = 'u32[]', space=smem, size = 0x4, offset = 0x4, fixed_abs, tag = 'smem constant byte address 0x4 - core index']
  #allocation1 [shape = 'u32[72,128]{1,0:T(1,128)}', space=vmem, size = 0x9000, scoped, tag = 'internal scratch']
  %s0 = inlined_call_operand.hbm [shape: f32[2,8,128], index: 0, kind: input, shape index: {}]
  %s1 = inlined_call_operand.hbm [shape: f32[5000,128], index: 1, kind: input, shape index: {}]
  %s2 = inlined_call_operand.hbm [shape: f32[2,8,256], index: 2, kind: output, shape index: {}]
  %s3 = sld [smem:[#allocation0]]
  $region26: #{tpu_custom_call.1} parent=0
    _
  %s5 = ssub.s32 1, %s3
  %s6 = scalar_select 0, %s5, %s3
  $region1: #{tpu_custom_call.1} parent=0
    #allocation2 [shape = 'u8[8192]{0}', space=vmem, size = 0x2000, scoped, tag = 'input window, operand 0, single buffered']
    #allocation3 [shape = 's32[1]{0}', space=sflag, size = 0x4, scoped, tag = 'scoped memory for tpu_custom_call.1']
    #allocation4 [shape = 's32[1]{0}', space=sflag, size = 0x4, scoped, tag = 'scoped memory for tpu_custom_call.1']
    #allocation5 [shape = 'u8[4096]{0}', space=vmem, size = 0x1000, scoped, tag = 'input window, operand 1, single buffered']
    #allocation6 [shape = 's32[1]{0}', space=sflag, size = 0x4, scoped, tag = 'scoped memory for tpu_custom_call.1']
    #allocation7 [shape = 'u8[16384]{0}', space=vmem, size = 0x4000, scoped, tag = 'output window, operand 0, single buffered']
    %7 = vsyncpa [#allocation3], 0
    %8 = vsyncpa [#allocation6], 0
    %9 = vsyncpa [#allocation4], 0
    // Predicated region
    $region2: #{tpu_custom_call.1} parent=1 // pred_check
      _
    $region3: #{tpu_custom_call.1} parent=1 // pred_check_branch
      %11 = sbr.rel (0) target = $region5
    $region4: #{tpu_custom_call.1} parent=1 // pred_region
      %13 = vsyncadd [#allocation3], 0
      %s14 = sshll.u32 %s0, 4
      %s15 = int_to_ptr.hbm [resolvable:$true] %s14
      %s16 = sshll.u32 [#allocation2], 4
      %s17 = int_to_ptr.vmem [resolvable:$true] %s16
      %22 = dma.hbm_to_vmem [thread:$0]  %s15, 256, %s17, [#allocation3], 128, 128, 8
    $region5: #{tpu_custom_call.1} parent=1 // pred_fallthru
      _
    // Predicated region
    $region6: #{tpu_custom_call.1} parent=1 // pred_check
      _
    $region7: #{tpu_custom_call.1} parent=1 // pred_check_branch
      %24 = sbr.rel (0) target = $region9
    $region8: #{tpu_custom_call.1} parent=1 // pred_region
      %26 = vsyncadd [#allocation6], 0
      %s28 = sshll.u32 %s1, 4
      %s29 = int_to_ptr.hbm [resolvable:$true] %s28
      %s30 = sshll.u32 [#allocation5], 4
      %s31 = int_to_ptr.vmem [resolvable:$true] %s30
      %33 = dma.hbm_to_vmem [thread:$0]  %s29, 128, %s31, [#allocation6]
    $region9: #{tpu_custom_call.1} parent=1 // pred_fallthru
      _
    // Predicated region
    $region10: #{tpu_custom_call.1} parent=1 // pred_check
      _
    $region11: #{tpu_custom_call.1} parent=1 // pred_check_branch
      %35 = sbr.rel (0) target = $region13
    $region12: #{tpu_custom_call.1} parent=1 // pred_region
      %37 = dma.done [#allocation3], 256
    $region13: #{tpu_custom_call.1} parent=1 // pred_fallthru
      _
    // Predicated region
    $region14: #{tpu_custom_call.1} parent=1 // pred_check
      _
    $region15: #{tpu_custom_call.1} parent=1 // pred_check_branch
      %39 = sbr.rel (0) target = $region17
    $region16: #{tpu_custom_call.1} parent=1 // pred_region
      %41 = dma.done [#allocation6], 128
    $region17: #{tpu_custom_call.1} parent=1 // pred_fallthru
      _
    %v42 = vld [vmem:[#allocation2] sm:$0xff]
    %v43 = vld [vmem:[#allocation2 + $0x8] sm:$0xff]
    %44 = vst [vmem:[#allocation7] sm:$0xff] %v42
    %45 = vst [vmem:[#allocation7 + $0x10] sm:$0xff] %v43
    %v46 = vld [vmem:[#allocation5] sm:$0xff]
    %47 = vst [vmem:[#allocation7 + $0x8] sm:$0xff] %v46
    %s48 = scalar_lea.vmem [#allocation7], 16
    %49 = vst [vmem:[%s48 + $0x8] sm:$0xff] %v46
    // Predicated region
    $region18: #{tpu_custom_call.1} parent=1 // pred_check
      _
    $region19: #{tpu_custom_call.1} parent=1 // pred_check_branch
      %51 = sbr.rel (0) target = $region21
    $region20: #{tpu_custom_call.1} parent=1 // pred_region
      %53 = vsyncadd [#allocation4], 0
      %s54 = sshll.u32 [#allocation7], 4
      %s55 = int_to_ptr.vmem [resolvable:$true] %s54
      %s56 = sshll.u32 %s2, 4
      %s57 = int_to_ptr.hbm [resolvable:$true] %s56
      %62 = dma.vmem_to_hbm [thread:$0]  %s55, 512, %s57, [#allocation4], 256, 256, 16
    $region21: #{tpu_custom_call.1} parent=1 // pred_fallthru
      _
    // Predicated region
    $region22: #{tpu_custom_call.1} parent=1 // pred_check
      _
    $region23: #{tpu_custom_call.1} parent=1 // pred_check_branch
      %64 = sbr.rel (0) target = $region25
    $region24: #{tpu_custom_call.1} parent=1 // pred_region
      %66 = dma.done [#allocation4], 512
    $region25: #{tpu_custom_call.1} parent=1 // pred_fallthru
      _
    %67 = vsyncpa [#allocation3], 1
    %68 = vsyncpa [#allocation6], 1
    %69 = vsyncpa [#allocation4], 1

</llo_original>
